<compile_context>
chip_gen: v7x
topology: tpu7x:2x2x1
jax: 0.10.0
libtpu: 0.0.40
codegen_flags: <defaults>
</compile_context>

<pallas_src>
import math

import jax
import jax.numpy as jnp
from jax.experimental import pallas as pl
from jax.experimental.pallas import tpu as pltpu


def _input_layer_kernel(x_ref, w_ref, b_ref, pe_ref, o_ref):
    # x_ref:  (Rb, E)   row block of the flattened (N*S, E) input
    # w_ref:  (E, D)    Linear weight, transposed to (in, out)   (grid-invariant)
    # b_ref:  (1, D)    Linear bias                              (grid-invariant)
    # pe_ref: (S, D)    positional encoding for one sequence     (grid-invariant)
    # o_ref:  (Rb, D)
    rb, d = o_ref.shape
    s = pe_ref.shape[0]
    y = jnp.dot(x_ref[...], w_ref[...], preferred_element_type=jnp.float32)
    y = jnp.maximum(y + b_ref[...], 0.0)            # bias + ReLU (VPU, full-tile)
    # PE broadcast over batch: leading-dim-only reshape, D stays on lanes.
    y = y.reshape(rb // s, s, d) + pe_ref[...][None, :, :]
    o_ref[...] = y.reshape(rb, d).astype(o_ref.dtype)   # one aligned lane-dense store


def make_positional_encoding(d_model: int, max_len: int) -> jnp.ndarray:
    """Matches PositionalEncoding.__init__ buffer `pe` (without the leading 1 dim)."""
    position = jnp.arange(max_len, dtype=jnp.float32)[:, None]
    div_term = jnp.exp(
        jnp.arange(0, d_model, 2, dtype=jnp.float32) * (-math.log(10000.0) / d_model)
    )
    pe = jnp.zeros((max_len, d_model), dtype=jnp.float32)
    pe = pe.at[:, 0::2].set(jnp.sin(position * div_term))
    if d_model % 2 != 0:
        pe = pe.at[:, 1::2].set(jnp.cos(position * div_term)[:, :-1])
    else:
        pe = pe.at[:, 1::2].set(jnp.cos(position * div_term))
    return pe


def _ceil_div(a: int, b: int) -> int:
    return -(-a // b)


def input_layer(src, w, b, pe, *, rows_per_block: int = 8192, out_dtype=jnp.float32):
    """
    src: (N, S, E) float32
    w:   (D, E)    PyTorch Linear weight layout
    b:   (D,)
    pe:  (max_len, D) with max_len >= S  (torch broadcast requires max_len == S; pe[:S] used)
    returns: (N, S, D) out_dtype (default float32, matching the PyTorch module)
    """
    N, S, E = src.shape
    D = w.shape[0]
    assert pe.shape[0] >= S and pe.shape[1] == D

    rows = N * S
    # Row-block sizing:
    #  * rb must be a multiple of S (PE phase repeats exactly within a block) and
    #    of 8 (sublane alignment when the grid has >1 step)  -> unit = lcm(S, 8).
    #  * No tail padding: grid = ceil(rows / rb); Pallas masks the partial last
    #    block on writeback (garbage rows never contaminate valid rows -- the op
    #    is purely row-wise).
    #  * Prefer >= 2 blocks so the "parallel" axis splits across v7x's 2 TCs.
    unit = math.lcm(S, 8)
    rb_cap = max(unit, (rows_per_block // unit) * unit)
    if rows <= rb_cap:
        rb = rows                                   # single block == full array dims
        if rows >= 2 * unit:                        # split into 2 blocks for megacore
            rb = ((_ceil_div(rows, 2) + unit - 1) // unit) * unit
    else:
        rb = rb_cap
    n_blocks = _ceil_div(rows, rb)

    x2d = src.reshape(rows, E)                      # free reshape: merge (batch, seq)
    w_t = jnp.transpose(w)                          # (E, D)
    b2d = b.reshape(1, D)
    pe_s = pe[:S]                                   # (S, D), grid-invariant

    out2d = pl.pallas_call(
        _input_layer_kernel,
        out_shape=jax.ShapeDtypeStruct((rows, D), out_dtype),
        grid_spec=pltpu.PrefetchScalarGridSpec(
            num_scalar_prefetch=0,
            grid=(n_blocks,),
            in_specs=[
                pl.BlockSpec((rb, E), lambda i: (i, 0)),   # streamed input rows
                pl.BlockSpec((E, D), lambda i: (0, 0)),    # W^T   (grid-invariant)
                pl.BlockSpec((1, D), lambda i: (0, 0)),    # bias  (grid-invariant)
                pl.BlockSpec((S, D), lambda i: (0, 0)),    # PE    (grid-invariant)
            ],
            out_specs=pl.BlockSpec((rb, D), lambda i: (i, 0)),
        ),
        compiler_params=pltpu.CompilerParams(
            dimension_semantics=("parallel",),
        ),
    )(x2d, w_t, b2d, pe_s)

    return out2d.reshape(N, S, D)


def reference_forward(src, w, b, pe):
    """Pure-JAX reference mirroring the PyTorch module (eval mode)."""
    x = jnp.einsum("nse,de->nsd", src, w) + b        # Linear
    x = jnp.maximum(x, 0.0)                          # ReLU
    return x + pe[None, : x.shape[1], :]             # PositionalEncoding (dropout = identity)


if __name__ == "__main__":
    # Small shapes consistent with the module docstring: (batch, 32, 27) -> (batch, 32, 128).
    S = 32         # sequence length
    E = 27         # embedding_size
    D = 128        # d_model (lane-dense output)
    max_len = 32   # PositionalEncoding max_len (== S, required for torch broadcast to work)
    # TODO(synk): dropout is treated as identity (eval mode); stochastic dropout would need
    # pltpu.prng_* and would not match torch's RNG stream anyway.

    key = jax.random.PRNGKey(0)
    k_src, k_w, k_b = jax.random.split(key, 3)

    initrange = 0.1  # matches init_weights()
    w = jax.random.uniform(k_w, (D, E), jnp.float32, -initrange, initrange)
    b = jax.random.uniform(k_b, (D,), jnp.float32, -initrange, initrange)
    pe = make_positional_encoding(D, max_len)        # (32, 128)

    # Case 1: even block count (exercises multi-block grid, full blocks).
    # Case 2: odd row multiple -> partial (masked) last block, no pad/slice path.
    for N in (2, 3):
        src = jax.random.normal(k_src, (N, S, E), dtype=jnp.float32)
        out = input_layer(src, w, b, pe)
        out = jax.block_until_ready(out)

        ref = reference_forward(src, w, b, pe)
        assert out.shape == (N, S, D), out.shape
        max_err = float(jnp.max(jnp.abs(out - ref)))
        assert jnp.allclose(out, ref, atol=1e-5, rtol=1e-5), (
            f"mismatch vs reference for N={N} (max abs err {max_err})"
        )

    print("KERNEL_OK")
</pallas_src>

<mosaic_0001>
module attributes {stable_mosaic.version = 11 : i64} {
  func.func @_input_layer_kernel(%arg0: i32, %arg1: memref<32x27xf32, #tpu.memory_space<vmem>>, %arg2: memref<27x128xf32, #tpu.memory_space<vmem>>, %arg3: memref<1x128xf32, #tpu.memory_space<vmem>>, %arg4: memref<32x128xf32, #tpu.memory_space<vmem>>, %arg5: memref<32x128xf32, #tpu.memory_space<vmem>>) attributes {dimension_semantics = [#tpu.dimension_semantics<parallel>], iteration_bounds = array<i64: 2>, scalar_prefetch = 0 : i64, scratch_operands = 0 : i64, tpu.core_type = #tpu.core_type<tc>, window_params = [{transform_indices = @transform_0, window_bounds = array<i64: 32, 27>}, {pipeline_mode = #tpu.pipeline_mode<synchronous>, transform_indices = @transform_1, window_bounds = array<i64: 27, 128>}, {pipeline_mode = #tpu.pipeline_mode<synchronous>, transform_indices = @transform_2, window_bounds = array<i64: 1, 128>}, {pipeline_mode = #tpu.pipeline_mode<synchronous>, transform_indices = @transform_3, window_bounds = array<i64: 32, 128>}, {transform_indices = @transform_4, window_bounds = array<i64: 32, 128>}]} {
    %c0 = arith.constant 0 : index
    %c0_0 = arith.constant 0 : index
    %0 = vector.load %arg1[%c0, %c0_0] : memref<32x27xf32, #tpu.memory_space<vmem>>, vector<32x27xf32>
    %c0_1 = arith.constant 0 : index
    %c0_2 = arith.constant 0 : index
    %1 = vector.load %arg2[%c0_1, %c0_2] : memref<27x128xf32, #tpu.memory_space<vmem>>, vector<27x128xf32>
    %cst = arith.constant dense<0.000000e+00> : vector<32x128xf32>
    %2 = tpu.matmul %0, %1, %cst {dimension_numbers = #tpu.dot_dimension_numbers<[1], [0], [0], [1], [0, 0, 1, 1], [], []>} : vector<32x27xf32>, vector<27x128xf32>, vector<32x128xf32> -> vector<32x128xf32>
    %c0_3 = arith.constant 0 : index
    %c0_4 = arith.constant 0 : index
    %3 = vector.load %arg3[%c0_3, %c0_4] : memref<1x128xf32, #tpu.memory_space<vmem>>, vector<1x128xf32>
    %4 = vector.broadcast %3 : vector<1x128xf32> to vector<32x128xf32>
    %5 = arith.addf %2, %4 : vector<32x128xf32>
    %cst_5 = arith.constant 0.000000e+00 : f32
    %6 = vector.broadcast %cst_5 : f32 to vector<32x128xf32>
    %7 = arith.maximumf %5, %6 : vector<32x128xf32>
    %8 = vector.shape_cast %7 : vector<32x128xf32> to vector<1x32x128xf32>
    %c0_6 = arith.constant 0 : index
    %c0_7 = arith.constant 0 : index
    %9 = vector.load %arg4[%c0_6, %c0_7] : memref<32x128xf32, #tpu.memory_space<vmem>>, vector<32x128xf32>
    %10 = vector.shape_cast %9 : vector<32x128xf32> to vector<1x32x128xf32>
    %11 = arith.addf %8, %10 : vector<1x32x128xf32>
    %12 = vector.shape_cast %11 : vector<1x32x128xf32> to vector<32x128xf32>
    %c0_8 = arith.constant 0 : index
    %c0_9 = arith.constant 0 : index
    %13 = vector.load %arg5[%c0_8, %c0_9] : memref<32x128xf32, #tpu.memory_space<vmem>>, vector<32x128xf32>
    tpu.vector_store %arg5[%c0_8, %c0_9], %12 {strides = array<i32>} : memref<32x128xf32, #tpu.memory_space<vmem>>, vector<32x128xf32>,
    return
  }
  func.func @transform_0(%arg0: i32) -> (i32, i32) {
    %c0_i32 = arith.constant 0 : i32
    %c0_i32_0 = arith.constant 0 : i32
    return %arg0, %c0_i32 : i32, i32
  }
  func.func @transform_1(%arg0: i32) -> (i32, i32) {
    %c0_i32 = arith.constant 0 : i32
    %c0_i32_0 = arith.constant 0 : i32
    %c0_i32_1 = arith.constant 0 : i32
    return %c0_i32, %c0_i32_0 : i32, i32
  }
  func.func @transform_2(%arg0: i32) -> (i32, i32) {
    %c0_i32 = arith.constant 0 : i32
    %c0_i32_0 = arith.constant 0 : i32
    %c0_i32_1 = arith.constant 0 : i32
    return %c0_i32, %c0_i32_0 : i32, i32
  }
  func.func @transform_3(%arg0: i32) -> (i32, i32) {
    %c0_i32 = arith.constant 0 : i32
    %c0_i32_0 = arith.constant 0 : i32
    %c0_i32_1 = arith.constant 0 : i32
    return %c0_i32, %c0_i32_0 : i32, i32
  }
  func.func @transform_4(%arg0: i32) -> (i32, i32) {
    %c0_i32 = arith.constant 0 : i32
    %c0_i32_0 = arith.constant 0 : i32
    return %arg0, %c0_i32 : i32, i32
  }
}

</mosaic_0001>

<llo_original>
// kernel: tpu_custom_call.1
$region0: #{tpu_custom_call.1}
  #allocation0 [shape = 'u32[]', space=smem, size = 0x4, offset = 0x4, fixed_abs, tag = 'smem constant byte address 0x4 - core index']
  #allocation1 [shape = 'u32[144,128]{1,0:T(1,128)}', space=vmem, size = 0x12000, scoped, tag = 'internal scratch']
  %s0 = inlined_call_operand.vmem [shape: f32[64,27], index: 0, kind: input, shape index: {}]
  %s1 = inlined_call_operand.vmem [shape: f32[27,128], index: 1, kind: input, shape index: {}]
  %s2 = inlined_call_operand.vmem [shape: f32[1,128], index: 2, kind: input, shape index: {}]
  %s3 = inlined_call_operand.vmem [shape: f32[32,128], index: 3, kind: input, shape index: {}]
  %s4 = inlined_call_operand.hbm [shape: f32[64,128], index: 4, kind: output, shape index: {}]
  %s5 = sld [smem:[#allocation0]]
  $region49: #{tpu_custom_call.1} parent=0
    _
  %s7 = ssub.s32 1, %s5
  %s8 = scalar_select 0, %s7, %s5
  $region1: #{tpu_custom_call.1} parent=0
    #allocation2 [shape = 'u8[32768]{0}', space=vmem, size = 0x8000, scoped, tag = 'output window, operand 0']
    #allocation3 [shape = 's32[2]{0}', space=sflag, size = 0x8, scoped, tag = 'scoped memory for tpu_custom_call.1']
    %9 = vsyncpa [#allocation3], 0
    %s10 = scalar_lea.sflag [#allocation3], 1
    %11 = vsyncpa %s10, 0
    loop: start=0, step=1, limit=4
    $region2: #{tpu_custom_call.1} parent=1 // loop_pre_header
      _
    $region3: #{tpu_custom_call.1} parent=1 // loop_header
      %s13 = sphi 0, %s17
      %p14 = scmp.ge.s32.totalorder %s13, 4
      %s23 = sphi 0, %s25
      %s26 = sphi 0, %s23
      %s27 = sphi 0, %s26
      %s43 = sphi 0, %s27
      %s47 = sphi 0, %s47
      %s49 = sphi 0, %s47
      %s50 = sphi 0, %s49
      %s64 = sphi 0, %s50
      %s68 = sphi 0, %s68
      %s70 = sphi 0, %s68
      %s71 = sphi 0, %s70
      %s85 = sphi 0, %s71
      %s89 = sphi 0, %s89
      %s91 = sphi 0, %s89
      %s92 = sphi 0, %s91
      %s106 = sphi 0, %s92
      %s112 = sphi 0, %s114
      %s115 = sphi 0, %s112
      %s116 = sphi 0, %s115
      %s132 = sphi 0, %s116
    $region4: #{tpu_custom_call.1} parent=1 // loop_header_branch
      %16 = sbr.rel (%p14) target = $region8
    $region5: #{tpu_custom_call.1} parent=1 // loop_body
      %s18 = ssub.s32 %s13, 1
      %s19 = ssub.s32 %s13, 2
      %s20 = sadd.s32 %s13, 1
      %s21 = ssub.s32 %s13, %s20
      %p22 = scmp.eq.s32.totalorder %s21, 0
      %s24 = sadd.s32 %s23, 1
      %s25 = scalar_select %p22, %s23, %s24
      %p28 = pneg %p22
      %p29 = scmp.eq.s32.totalorder %s13, 1
      %p30 = por %p28, %p29
      %p31 = scmp.ne.s32.totalorder %s23, %s26
      %p32 = scmp.eq.s32.totalorder %s13, 0
      %p33 = por %p31, %p32
      %p34 = scmp.ne.s32.totalorder %s23, %s26
      %p35 = scmp.eq.s32.totalorder %s18, 1
      %p36 = por %p34, %p35
      %p37 = scmp.ne.s32.totalorder %s26, %s27
      %p38 = scmp.eq.s32.totalorder %s18, 0
      %p39 = por %p37, %p38
      %p40 = scmp.ne.s32.totalorder %s26, %s27
      %p41 = scmp.eq.s32.totalorder %s19, 1
      %p42 = por %p40, %p41
      %p44 = scmp.ne.s32.totalorder %s27, %s43
      %p45 = scmp.eq.s32.totalorder %s19, 0
      %p46 = por %p44, %p45
      %s48 = sadd.s32 %s47, 1
      %p51 = scmp.eq.s32.totalorder %s13, 1
      %p52 = scmp.ne.s32.totalorder %s47, %s49
      %p53 = scmp.eq.s32.totalorder %s13, 0
      %p54 = por %p52, %p53
      %p55 = scmp.ne.s32.totalorder %s47, %s49
      %p56 = scmp.eq.s32.totalorder %s18, 1
      %p57 = por %p55, %p56
      %p58 = scmp.ne.s32.totalorder %s49, %s50
      %p59 = scmp.eq.s32.totalorder %s18, 0
      %p60 = por %p58, %p59
      %p61 = scmp.ne.s32.totalorder %s49, %s50
      %p62 = scmp.eq.s32.totalorder %s19, 1
      %p63 = por %p61, %p62
      %p65 = scmp.ne.s32.totalorder %s50, %s64
      %p66 = scmp.eq.s32.totalorder %s19, 0
      %p67 = por %p65, %p66
      %s69 = sadd.s32 %s68, 1
      %p72 = scmp.eq.s32.totalorder %s13, 1
      %p73 = scmp.ne.s32.totalorder %s68, %s70
      %p74 = scmp.eq.s32.totalorder %s13, 0
      %p75 = por %p73, %p74
      %p76 = scmp.ne.s32.totalorder %s68, %s70
      %p77 = scmp.eq.s32.totalorder %s18, 1
      %p78 = por %p76, %p77
      %p79 = scmp.ne.s32.totalorder %s70, %s71
      %p80 = scmp.eq.s32.totalorder %s18, 0
      %p81 = por %p79, %p80
      %p82 = scmp.ne.s32.totalorder %s70, %s71
      %p83 = scmp.eq.s32.totalorder %s19, 1
      %p84 = por %p82, %p83
      %p86 = scmp.ne.s32.totalorder %s71, %s85
      %p87 = scmp.eq.s32.totalorder %s19, 0
      %p88 = por %p86, %p87
      %s90 = sadd.s32 %s89, 1
      %p93 = scmp.eq.s32.totalorder %s13, 1
      %p94 = scmp.ne.s32.totalorder %s89, %s91
      %p95 = scmp.eq.s32.totalorder %s13, 0
      %p96 = por %p94, %p95
      %p97 = scmp.ne.s32.totalorder %s89, %s91
      %p98 = scmp.eq.s32.totalorder %s18, 1
      %p99 = por %p97, %p98
      %p100 = scmp.ne.s32.totalorder %s91, %s92
      %p101 = scmp.eq.s32.totalorder %s18, 0
      %p102 = por %p100, %p101
      %p103 = scmp.ne.s32.totalorder %s91, %s92
      %p104 = scmp.eq.s32.totalorder %s19, 1
      %p105 = por %p103, %p104
      %p107 = scmp.ne.s32.totalorder %s92, %s106
      %p108 = scmp.eq.s32.totalorder %s19, 0
      %p109 = por %p107, %p108
      %s110 = ssub.s32 %s13, %s20
      %p111 = scmp.eq.s32.totalorder %s110, 0
      %s113 = sadd.s32 %s112, 1
      %s114 = scalar_select %p111, %s112, %s113
      %p117 = pneg %p111
      %p118 = scmp.eq.s32.totalorder %s13, 1
      %p119 = por %p117, %p118
      %p120 = scmp.ne.s32.totalorder %s112, %s115
      %p121 = scmp.eq.s32.totalorder %s13, 0
      %p122 = por %p120, %p121
      %p123 = scmp.ne.s32.totalorder %s112, %s115
      %p124 = scmp.eq.s32.totalorder %s18, 1
      %p125 = por %p123, %p124
      %p126 = scmp.ne.s32.totalorder %s115, %s116
      %p127 = scmp.eq.s32.totalorder %s18, 0
      %p128 = por %p126, %p127
      %p129 = scmp.ne.s32.totalorder %s115, %s116
      %p130 = scmp.eq.s32.totalorder %s19, 1
      %p131 = por %p129, %p130
      %p133 = scmp.ne.s32.totalorder %s116, %s132
      %p134 = scmp.eq.s32.totalorder %s19, 0
      %p135 = por %p133, %p134
      %p136 = scmp.le.s32.totalorder 1, %s13
      %p137 = scmp.lt.s32.totalorder %s13, 3
      %p138 = pnand %p136, %p137
      %p139 = pneg %p138
      // Predicated region
      $region9: #{tpu_custom_call.1} parent=5 // pred_check
        _
      $region10: #{tpu_custom_call.1} parent=5 // pred_check_branch
        %141 = sbr.rel (%p138) target = $region12
      $region11: #{tpu_custom_call.1} parent=5 // pred_region
        %s142 = ssub.s32 %s13, 1
        // Predicated region
        $region13: #{tpu_custom_call.1} parent=11 // pred_check
          %p143 = pneg %p60
        $region14: #{tpu_custom_call.1} parent=11 // pred_check_branch
          %145 = sbr.rel (%p143) target = $region16
        $region15: #{tpu_custom_call.1} parent=11 // pred_region
          _
        $region16: #{tpu_custom_call.1} parent=11 // pred_fallthru
          _
        // Predicated region
        $region17: #{tpu_custom_call.1} parent=11 // pred_check
          %p146 = pneg %p81
        $region18: #{tpu_custom_call.1} parent=11 // pred_check_branch
          %148 = sbr.rel (%p146) target = $region20
        $region19: #{tpu_custom_call.1} parent=11 // pred_region
          _
        $region20: #{tpu_custom_call.1} parent=11 // pred_fallthru
          _
        // Predicated region
        $region21: #{tpu_custom_call.1} parent=11 // pred_check
          %p149 = pneg %p102
        $region22: #{tpu_custom_call.1} parent=11 // pred_check_branch
          %151 = sbr.rel (%p149) target = $region24
        $region23: #{tpu_custom_call.1} parent=11 // pred_region
          _
        $region24: #{tpu_custom_call.1} parent=11 // pred_fallthru
          _
      $region12: #{tpu_custom_call.1} parent=5 // pred_fallthru
        _
      %p152 = scmp.lt.s32.totalorder %s13, 2
      // Predicated region
      $region25: #{tpu_custom_call.1} parent=5 // pred_check
        %p153 = pneg %p152
      $region26: #{tpu_custom_call.1} parent=5 // pred_check_branch
        %155 = sbr.rel (%p153) target = $region28
      $region27: #{tpu_custom_call.1} parent=5 // pred_region
        // Predicated region
        $region29: #{tpu_custom_call.1} parent=27 // pred_check
          %p156 = pneg %p33
        $region30: #{tpu_custom_call.1} parent=27 // pred_check_branch
          %158 = sbr.rel (%p156) target = $region32
        $region31: #{tpu_custom_call.1} parent=27 // pred_region
          %s159 = smul.u32 4, %s13
          %p160 = scmp.lt.s32.totalorder %s159, 7
          %s161 = scalar_select %p160, %s159, 7
          %s162 = smul.addr %s161, 8
          %s163 = scalar_lea.vmem %s0, %s162
          %s164 = smul.u32 4, %s13
        $region32: #{tpu_custom_call.1} parent=27 // pred_fallthru
          _
      $region28: #{tpu_custom_call.1} parent=5 // pred_fallthru
        _
      %p165 = scmp.le.s32.totalorder 1, %s13
      %p166 = scmp.lt.s32.totalorder %s13, 3
      %p167 = pnand %p165, %p166
      %p168 = pneg %p167
      // Predicated region
      $region33: #{tpu_custom_call.1} parent=5 // pred_check
        _
      $region34: #{tpu_custom_call.1} parent=5 // pred_check_branch
        %170 = sbr.rel (%p167) target = $region36
      $region35: #{tpu_custom_call.1} parent=5 // pred_region
        %s171 = ssub.s32 %s13, 1
        %s172 = smul.u32 4, %s18
        %p173 = scmp.lt.s32.totalorder %s172, 7
        %s174 = scalar_select %p173, %s172, 7
        %s175 = smul.addr %s174, 8
        %s176 = scalar_lea.vmem %s0, %s175
        %p177 = pneg %p39
        %p178 = pneg %p36
        %p179 = pneg %p60
        %p180 = pneg %p57
        %p181 = pneg %p81
        %p182 = pneg %p78
        %p183 = pneg %p102
        %p184 = pneg %p99
        %p185 = pneg %p128
        %p186 = pneg %p125
        %s187 = sand.u32 %s115, 1
        %s188 = scalar_lea.sflag [#allocation3], %s187
        %s189 = sand.u32 %s115, 1
        %s190 = smul.addr %s189, 32
        %s191 = scalar_lea.vmem [#allocation2], %s190
        %s192 = smul.u32 4, %s18
        %p193 = scmp.lt.s32.totalorder %s192, 7
        %s194 = scalar_select %p193, %s192, 7
        %s195 = smul.addr %s194, 8
        %s196 = scalar_lea.vmem %s0, %s195
        %s197 = smul.u32 4, %s18
        %s198 = smul.u32 4, %s18
        %v199 = vld [vmem:[%s196] sm:$0xff]
        %v200 = vld [vmem:[%s196 + $0x8] sm:$0xff]
        %v201 = vld [vmem:[%s196 + $0x10] sm:$0xff]
        %v202 = vld [vmem:[%s196 + $0x18] sm:$0xff]
        %v203 = vld [vmem:[%s1] sm:$0xff]
        %v204 = vld [vmem:[%s1 + $0x8] sm:$0xff]
        %v205 = vld [vmem:[%s1 + $0x10] sm:$0xff]
        %v206 = vld [vmem:[%s1 + $0x18] sm:$0x7]
        %v207 = vld [vmem:[%s2] sm:$0x1]
        %v209 = vlaneseq
        %v210 = vshrl.u32 %v209, 7
        %v211 = vsub.s32 0, %v210
        %v212 = vrot.slane %v207, %v211
        %vm214 = vcmask 220160
        %v216 = vsel %vm214, %v199, 0
        %v219 = vsel %vm214, %v200, 0
        %v222 = vsel %vm214, %v201, 0
        %v225 = vsel %vm214, %v202, 0
        %vm227 = vcmask 1042432
        %v229 = vsel %vm227, %v206, 0
        %231 = vmatprep.subr.mxu0 0.0
        %232 = vmatpush1.msra.mxu0 %v203
        %233 = vmatprep.subr.mxu0 0.0
        %234 = vmatpush1.msra.mxu0 %v204
        %235 = vmatprep.subr.mxu0 0.0
        %236 = vmatpush1.msra.mxu0 %v205
        %237 = vmatprep.subr.mxu0 0.0
        %238 = vmatpush1.msra.mxu0 %v229
        %239 = vmatprep.subr.mxu0 0.0
        %240 = vmatpush1.msra.mxu0 0.0
        %241 = vmatprep.subr.mxu0 0.0
        %242 = vmatpush1.msra.mxu0 0.0
        %243 = vmatprep.subr.mxu0 0.0
        %244 = vmatpush1.msra.mxu0 0.0
        %245 = vmatprep.subr.mxu0 0.0
        %246 = vmatpush1.msra.mxu0 0.0
        %247 = vmatprep.subr.mxu0 0.0
        %248 = vmatpush1.msra.mxu0 0.0
        %249 = vmatprep.subr.mxu0 0.0
        %250 = vmatpush1.msra.mxu0 0.0
        %251 = vmatprep.subr.mxu0 0.0
        %252 = vmatpush1.msra.mxu0 0.0
        %253 = vmatprep.subr.mxu0 0.0
        %254 = vmatpush1.msra.mxu0 0.0
        %255 = vmatprep.subr.mxu0 0.0
        %256 = vmatpush1.msra.mxu0 0.0
        %257 = vmatprep.subr.mxu0 0.0
        %258 = vmatpush1.msra.mxu0 0.0
        %259 = vmatprep.subr.mxu0 0.0
        %260 = vmatpush1.msra.mxu0 0.0
        %261 = vmatprep.subr.mxu0 0.0
        %262 = vmatpush1.msra.mxu0 0.0
        %263 = vmatprep.subr.mxu0 0.0
        %264 = vmatpush1.msra.mxu0 0.0
        %265 = vmatprep.subr.mxu0 0.0
        %266 = vmatpush1.msra.mxu0 0.0
        %267 = vmatprep.subr.mxu0 0.0
        %268 = vmatpush1.msra.mxu0 0.0
        %269 = vmatprep.subr.mxu0 0.0
        %270 = vmatpush1.msra.mxu0 0.0
        %271 = vmatprep.subr.mxu0 0.0
        %272 = vmatpush1.msra.mxu0 0.0
        %273 = vmatprep.subr.mxu0 0.0
        %274 = vmatpush1.msra.mxu0 0.0
        %275 = vmatprep.subr.mxu0 0.0
        %276 = vmatpush1.msra.mxu0 0.0
        %277 = vmatprep.subr.mxu0 0.0
        %278 = vmatpush1.msra.mxu0 0.0
        %279 = vmatprep.subr.mxu0 0.0
        %280 = vmatpush1.msra.mxu0 0.0
        %281 = vmatprep.subr.mxu0 0.0
        %282 = vmatpush1.msra.mxu0 0.0
        %283 = vmatprep.subr.mxu0 0.0
        %284 = vmatpush1.msra.mxu0 0.0
        %285 = vmatprep.subr.mxu0 0.0
        %286 = vmatpush1.msra.mxu0 0.0
        %287 = vmatprep.subr.mxu0 0.0
        %288 = vmatpush1.msra.mxu0 0.0
        %289 = vmatprep.subr.mxu0 0.0
        %290 = vmatpush1.msra.mxu0 0.0
        %291 = vmatprep.subr.mxu0 0.0
        %292 = vmatpush1.msra.mxu0 0.0
        %293 = vmatprep.subr.mxu0 0.0
        %294 = vmatpush1.msra.mxu0 0.0
        %295 = vmatprep.mubr.f32.mxu0 0.0
        %296 = vmatmul.mubr.f32.gmra.mrb[0].mxu0 %v216
        %v297 = vpop.f32.mrb[0].mxu0
        %v298 = vadd.f32 %v212, %v297
        %v299 = vpop.f32.mrb[0].mxu0
        %300 = vmatprep.mubr.f32.mxu0 0.0
        %301 = vmatmul.mubr.f32.gmra.mrb[0].mxu0 %v219
        %v302 = vpop.f32.mrb[0].mxu0
        %v303 = vadd.f32 %v212, %v302
        %v304 = vpop.f32.mrb[0].mxu0
        %305 = vmatprep.mubr.f32.mxu0 0.0
        %306 = vmatmul.mubr.f32.gmra.mrb[0].mxu0 %v222
        %v307 = vpop.f32.mrb[0].mxu0
        %v308 = vadd.f32 %v212, %v307
        %v309 = vpop.f32.mrb[0].mxu0
        %310 = vmatprep.mubr.f32.mxu0 0.0
        %311 = vmatmul.mubr.f32.gmra.mrb[0].mxu0 %v225
        %v312 = vpop.f32.mrb[0].mxu0
        %v313 = vadd.f32 %v212, %v312
        %v314 = vpop.f32.mrb[0].mxu0
        %315 = vdwg.mxu0
        %v316 = vmax.f32 %v298, 0.0
        %v317 = vmax.f32 %v303, 0.0
        %v318 = vmax.f32 %v308, 0.0
        %v319 = vmax.f32 %v313, 0.0
        %v320 = vld [vmem:[%s3] sm:$0xff]
        %v321 = vld [vmem:[%s3 + $0x8] sm:$0xff]
        %v322 = vld [vmem:[%s3 + $0x10] sm:$0xff]
        %v323 = vld [vmem:[%s3 + $0x18] sm:$0xff]
        %v324 = vadd.f32 %v316, %v320
        %v325 = vadd.f32 %v317, %v321
        %v326 = vadd.f32 %v318, %v322
        %v327 = vadd.f32 %v319, %v323
        %328 = vst [vmem:[%s191] sm:$0xff] %v324
        %329 = vst [vmem:[%s191 + $0x8] sm:$0xff] %v325
        %330 = vst [vmem:[%s191 + $0x10] sm:$0xff] %v326
        %331 = vst [vmem:[%s191 + $0x18] sm:$0xff] %v327
        %s332 = sand.u32 %s115, 1
        %s333 = scalar_lea.sflag [#allocation3], %s332
        %s334 = sand.u32 %s115, 1
        %s335 = smul.addr %s334, 32
        %s336 = scalar_lea.vmem [#allocation2], %s335
        // Predicated region
        $region37: #{tpu_custom_call.1} parent=35 // pred_check
          %p337 = pneg %p125
        $region38: #{tpu_custom_call.1} parent=35 // pred_check_branch
          %339 = sbr.rel (%p337) target = $region40
        $region39: #{tpu_custom_call.1} parent=35 // pred_region
          %s340 = smul.u32 4, %s18
          %s342 = ssub.s32 512, 512
          %343 = vsyncadd %s333, %s342
          %s344 = smul.addr %s340, 128
          %s345 = scalar_lea.hbm %s4, %s344
          %s346 = sshll.u32 %s336, 4
          %s347 = int_to_ptr.vmem [resolvable:$true] %s346
          %352 = dma.vmem_to_hbm [thread:$0]  %s347, 512, %s345, %s333, 128, 128, 8
        $region40: #{tpu_custom_call.1} parent=35 // pred_fallthru
          _
      $region36: #{tpu_custom_call.1} parent=5 // pred_fallthru
        _
      %p353 = scmp.le.s32.totalorder 2, %s13
      // Predicated region
      $region41: #{tpu_custom_call.1} parent=5 // pred_check
        %p354 = pneg %p353
      $region42: #{tpu_custom_call.1} parent=5 // pred_check_branch
        %356 = sbr.rel (%p354) target = $region44
      $region43: #{tpu_custom_call.1} parent=5 // pred_region
        %s357 = ssub.s32 %s13, 2
        // Predicated region
        $region45: #{tpu_custom_call.1} parent=43 // pred_check
          %p358 = pneg %p131
        $region46: #{tpu_custom_call.1} parent=43 // pred_check_branch
          %360 = sbr.rel (%p358) target = $region48
        $region47: #{tpu_custom_call.1} parent=43 // pred_region
          %s361 = sand.u32 %s116, 1
          %s362 = scalar_lea.sflag [#allocation3], %s361
          %s363 = sand.u32 %s116, 1
          %s364 = smul.addr %s363, 32
          %s365 = scalar_lea.vmem [#allocation2], %s364
          %366 = dma.done %s362, 512
        $region48: #{tpu_custom_call.1} parent=43 // pred_fallthru
          _
      $region44: #{tpu_custom_call.1} parent=5 // pred_fallthru
        _
    $region6: #{tpu_custom_call.1} parent=1 // loop_footer
      %s17 = sadd.s32 1, %s13
    $region7: #{tpu_custom_call.1} parent=1 // loop_footer_branch
      %12 = sbr.rel target = $region3
    $region8: #{tpu_custom_call.1} parent=1 // loop_exit
      _
    %367 = vsyncpa [#allocation3], 1
    %s368 = scalar_lea.sflag [#allocation3], 1
    %369 = vsyncpa %s368, 1

</llo_original>
